<compile_context>
chip_gen: v7x
topology: tpu7x:2x2x1
jax: 0.10.0
libtpu: 0.0.40
codegen_flags: <defaults>
</compile_context>

<pallas_src>
import functools

import jax
import jax.numpy as jnp
from jax.experimental import pallas as pl
from jax.experimental.pallas import tpu as pltpu


def _sdpa_kernel(q_ref, k_ref, v_ref, out_ref, attn_ref, *, inv_temperature):
    # Blocks: q (Bt, Lq, Dk), k (Bt, Lk, Dk), v (Bt, Lk, Dv).
    q = q_ref[...]
    k = k_ref[...]
    v = v_ref[...]

    # Batched QK^T on the MXU -> (Bt, Lq, Lk) f32 scores; fold 1/temperature
    # as a single fused multiply on the f32 accumulator output.
    scores = jnp.einsum("bqd,bkd->bqk", q, k,
                        preferred_element_type=jnp.float32) * inv_temperature

    # TODO(synk): optional `mask` argument (masked_fill(mask==0, -1e9)) is not
    # wired through pallas_call; only the mask=None path is implemented.

    # Numerically-stable softmax over the key axis; the denominator reciprocal
    # uses the (otherwise idle) EUP slot via approx=True.
    scores = scores - jnp.max(scores, axis=-1, keepdims=True)
    e = jnp.exp(scores)
    attn = e * pl.reciprocal(jnp.sum(e, axis=-1, keepdims=True), approx=True)

    # nn.Dropout(attn_dropout) in eval mode is the identity.

    out = jnp.einsum("bqk,bkd->bqd", attn.astype(v.dtype), v,
                     preferred_element_type=jnp.float32)

    out_ref[...] = out.astype(out_ref.dtype)
    attn_ref[...] = attn.astype(attn_ref.dtype)


def _pick_batch_tile(BH, Lq, Lk, Dk, Dv, itemsize,
                     vmem_budget_bytes=24 * 1024 * 1024):
    """Largest divisor of BH whose working set fits VMEM; prefer a 2-step split."""
    # Per-batch-row bytes: double-buffered I/O tiles + f32 intermediates.
    io_bytes = 2 * itemsize * (Lq * Dk + Lk * Dk + Lk * Dv   # inputs
                               + Lq * Dv + Lq * Lk)          # outputs
    tmp_bytes = 4 * (2 * Lq * Lk + Lq * Dv)                  # scores/e/acc (f32)
    per_row = io_bytes + tmp_bytes

    divisors = [d for d in range(1, BH + 1) if BH % d == 0]
    fitting = [d for d in divisors if d * per_row <= vmem_budget_bytes]
    if not fitting:
        return 1
    bt = max(fitting)
    # Prefer exactly 2 fat steps (megacore sharding on v7x) when that fits and
    # a single-step layout was the only larger option.
    if BH % 2 == 0 and (BH // 2) in fitting and bt == BH:
        bt = BH // 2
    return bt


def scaled_dot_product_attention(q, k, v, temperature, mask=None):
    """Pallas equivalent of ScaledDotProductAttention.forward (eval mode)."""
    if mask is not None:
        raise NotImplementedError("mask path not implemented in this kernel")

    B, H, Lq, Dk = q.shape
    _, _, Lk, Dv = v.shape
    BH = B * H

    qf = q.reshape(BH, Lq, Dk)
    kf = k.reshape(BH, Lk, Dk)
    vf = v.reshape(BH, Lk, Dv)

    bt = _pick_batch_tile(BH, Lq, Lk, Dk, Dv, q.dtype.itemsize)
    n_steps = BH // bt

    kern = functools.partial(_sdpa_kernel,
                             inv_temperature=float(1.0 / temperature))

    out_f, attn_f = pl.pallas_call(
        kern,
        out_shape=(
            jax.ShapeDtypeStruct((BH, Lq, Dv), q.dtype),
            jax.ShapeDtypeStruct((BH, Lq, Lk), q.dtype),
        ),
        grid_spec=pltpu.PrefetchScalarGridSpec(
            num_scalar_prefetch=0,
            grid=(n_steps,),
            in_specs=[
                pl.BlockSpec((bt, Lq, Dk), lambda i: (i, 0, 0)),
                pl.BlockSpec((bt, Lk, Dk), lambda i: (i, 0, 0)),
                pl.BlockSpec((bt, Lk, Dv), lambda i: (i, 0, 0)),
            ],
            out_specs=[
                pl.BlockSpec((bt, Lq, Dv), lambda i: (i, 0, 0)),
                pl.BlockSpec((bt, Lq, Lk), lambda i: (i, 0, 0)),
            ],
        ),
        compiler_params=pltpu.CompilerParams(
            dimension_semantics=("parallel",),
            vmem_limit_bytes=64 * 1024 * 1024,
        ),
    )(qf, kf, vf)

    return (out_f.reshape(B, H, Lq, Dv),
            attn_f.reshape(B, H, Lq, Lk))


def sdpa_ref(q, k, v, temperature):
    """Pure-JAX reference mirroring the PyTorch forward (eval mode, mask=None)."""
    scores = jnp.einsum("bhqd,bhkd->bhqk", q / temperature, k)
    attn = jax.nn.softmax(scores, axis=-1)
    out = jnp.einsum("bhqk,bhkd->bhqd", attn, v)
    return out, attn


if __name__ == "__main__":
    # Small shapes consistent with objectformer usage (few-head cross-attention,
    # small token counts): B=2, H=2, Lq=8 object tokens, Lk=16 patch tokens,
    # Dk=Dv=32, temperature = sqrt(Dk).
    B, H, Lq, Lk, Dk, Dv = 2, 2, 8, 16, 32, 32
    temperature = float(Dk) ** 0.5

    key = jax.random.PRNGKey(0)
    kq, kk, kv = jax.random.split(key, 3)
    q = jax.random.normal(kq, (B, H, Lq, Dk), jnp.float32)
    k = jax.random.normal(kk, (B, H, Lk, Dk), jnp.float32)
    v = jax.random.normal(kv, (B, H, Lk, Dv), jnp.float32)

    out, attn = scaled_dot_product_attention(q, k, v, temperature)
    out = jax.block_until_ready(out)
    attn = jax.block_until_ready(attn)

    out_ref, attn_ref = sdpa_ref(q, k, v, temperature)

    assert out.shape == (B, H, Lq, Dv)
    assert attn.shape == (B, H, Lq, Lk)
    # Tolerance slightly loosened vs 1e-4 because of the approx (EUP) softmax
    # reciprocal; real wiring errors would be orders of magnitude larger.
    assert jnp.allclose(out, out_ref, atol=2e-3, rtol=2e-3), "output mismatch"
    assert jnp.allclose(attn, attn_ref, atol=2e-3, rtol=2e-3), "attn mismatch"

    print("KERNEL_OK")
</pallas_src>

<mosaic_0001>
module attributes {stable_mosaic.version = 11 : i64} {
  func.func @_sdpa_kernel(%arg0: i32, %arg1: memref<2x8x32xf32, #tpu.memory_space<vmem>>, %arg2: memref<2x16x32xf32, #tpu.memory_space<vmem>>, %arg3: memref<2x16x32xf32, #tpu.memory_space<vmem>>, %arg4: memref<2x8x32xf32, #tpu.memory_space<vmem>>, %arg5: memref<2x8x16xf32, #tpu.memory_space<vmem>>) attributes {dimension_semantics = [#tpu.dimension_semantics<parallel>], iteration_bounds = array<i64: 2>, scalar_prefetch = 0 : i64, scratch_operands = 0 : i64, tpu.core_type = #tpu.core_type<tc>, window_params = [{transform_indices = @transform_0, window_bounds = array<i64: 2, 8, 32>}, {transform_indices = @transform_1, window_bounds = array<i64: 2, 16, 32>}, {transform_indices = @transform_2, window_bounds = array<i64: 2, 16, 32>}, {transform_indices = @transform_3, window_bounds = array<i64: 2, 8, 32>}, {transform_indices = @transform_4, window_bounds = array<i64: 2, 8, 16>}]} {
    %c0 = arith.constant 0 : index
    %c0_0 = arith.constant 0 : index
    %c0_1 = arith.constant 0 : index
    %0 = vector.load %arg1[%c0, %c0_0, %c0_1] : memref<2x8x32xf32, #tpu.memory_space<vmem>>, vector<2x8x32xf32>
    %c0_2 = arith.constant 0 : index
    %c0_3 = arith.constant 0 : index
    %c0_4 = arith.constant 0 : index
    %1 = vector.load %arg2[%c0_2, %c0_3, %c0_4] : memref<2x16x32xf32, #tpu.memory_space<vmem>>, vector<2x16x32xf32>
    %c0_5 = arith.constant 0 : index
    %c0_6 = arith.constant 0 : index
    %c0_7 = arith.constant 0 : index
    %2 = vector.load %arg3[%c0_5, %c0_6, %c0_7] : memref<2x16x32xf32, #tpu.memory_space<vmem>>, vector<2x16x32xf32>
    "tpu.trace_start"() <{level = 10 : i32, message = "bqd,bkd->bqk"}> : () -> ()
    %cst = arith.constant dense<0.000000e+00> : vector<2x8x16xf32>
    %3 = tpu.matmul %0, %1, %cst {dimension_numbers = #tpu.dot_dimension_numbers<[2], [2], [1], [1], [0, 0, 0, 1, 1, 1], [0], [0]>} : vector<2x8x32xf32>, vector<2x16x32xf32>, vector<2x8x16xf32> -> vector<2x8x16xf32>
    "tpu.trace_stop"() : () -> ()
    %cst_8 = arith.constant 0.176776692 : f32
    %4 = vector.broadcast %cst_8 : f32 to vector<2x8x16xf32>
    %5 = arith.mulf %3, %4 : vector<2x8x16xf32>
    %cst_9 = arith.constant dense<0xFF800000> : vector<2x8xf32>
    %6 = vector.multi_reduction <maximumf>, %5, %cst_9 [2] : vector<2x8x16xf32> to vector<2x8xf32>
    %7 = vector.shape_cast %6 : vector<2x8xf32> to vector<2x8x1xf32>
    %8 = vector.broadcast %7 : vector<2x8x1xf32> to vector<2x8x16xf32>
    %9 = arith.subf %5, %8 : vector<2x8x16xf32>
    %10 = math.exp %9 : vector<2x8x16xf32>
    %cst_10 = arith.constant dense<0.000000e+00> : vector<2x8xf32>
    %11 = vector.multi_reduction <add>, %10, %cst_10 [2] : vector<2x8x16xf32> to vector<2x8xf32>
    %12 = vector.shape_cast %11 : vector<2x8xf32> to vector<2x8x1xf32>
    %13 = tpu.reciprocal %12 {approx = true} : vector<2x8x1xf32> -> vector<2x8x1xf32>
    %14 = vector.broadcast %13 : vector<2x8x1xf32> to vector<2x8x16xf32>
    %15 = arith.mulf %10, %14 : vector<2x8x16xf32>
    "tpu.trace_start"() <{level = 10 : i32, message = "bqk,bkd->bqd"}> : () -> ()
    %cst_11 = arith.constant dense<0.000000e+00> : vector<2x8x32xf32>
    %16 = tpu.matmul %15, %2, %cst_11 {dimension_numbers = #tpu.dot_dimension_numbers<[2], [1], [1], [2], [0, 0, 0, 1, 1, 2], [0], [0]>} : vector<2x8x16xf32>, vector<2x16x32xf32>, vector<2x8x32xf32> -> vector<2x8x32xf32>
    "tpu.trace_stop"() : () -> ()
    %c0_12 = arith.constant 0 : index
    %c0_13 = arith.constant 0 : index
    %c0_14 = arith.constant 0 : index
    %17 = vector.load %arg4[%c0_12, %c0_13, %c0_14] : memref<2x8x32xf32, #tpu.memory_space<vmem>>, vector<2x8x32xf32>
    tpu.vector_store %arg4[%c0_12, %c0_13, %c0_14], %16 {strides = array<i32>} : memref<2x8x32xf32, #tpu.memory_space<vmem>>, vector<2x8x32xf32>,
    %c0_15 = arith.constant 0 : index
    %c0_16 = arith.constant 0 : index
    %c0_17 = arith.constant 0 : index
    %18 = vector.load %arg5[%c0_15, %c0_16, %c0_17] : memref<2x8x16xf32, #tpu.memory_space<vmem>>, vector<2x8x16xf32>
    tpu.vector_store %arg5[%c0_15, %c0_16, %c0_17], %15 {strides = array<i32>} : memref<2x8x16xf32, #tpu.memory_space<vmem>>, vector<2x8x16xf32>,
    return
  }
  func.func @transform_0(%arg0: i32) -> (i32, i32, i32) {
    %c0_i32 = arith.constant 0 : i32
    %c0_i32_0 = arith.constant 0 : i32
    %c0_i32_1 = arith.constant 0 : i32
    return %arg0, %c0_i32, %c0_i32_0 : i32, i32, i32
  }
  func.func @transform_1(%arg0: i32) -> (i32, i32, i32) {
    %c0_i32 = arith.constant 0 : i32
    %c0_i32_0 = arith.constant 0 : i32
    %c0_i32_1 = arith.constant 0 : i32
    return %arg0, %c0_i32, %c0_i32_0 : i32, i32, i32
  }
  func.func @transform_2(%arg0: i32) -> (i32, i32, i32) {
    %c0_i32 = arith.constant 0 : i32
    %c0_i32_0 = arith.constant 0 : i32
    %c0_i32_1 = arith.constant 0 : i32
    return %arg0, %c0_i32, %c0_i32_0 : i32, i32, i32
  }
  func.func @transform_3(%arg0: i32) -> (i32, i32, i32) {
    %c0_i32 = arith.constant 0 : i32
    %c0_i32_0 = arith.constant 0 : i32
    %c0_i32_1 = arith.constant 0 : i32
    return %arg0, %c0_i32, %c0_i32_0 : i32, i32, i32
  }
  func.func @transform_4(%arg0: i32) -> (i32, i32, i32) {
    %c0_i32 = arith.constant 0 : i32
    %c0_i32_0 = arith.constant 0 : i32
    %c0_i32_1 = arith.constant 0 : i32
    return %arg0, %c0_i32, %c0_i32_0 : i32, i32, i32
  }
}

</mosaic_0001>

<llo_original>
// kernel: tpu_custom_call.1
$region0: #{tpu_custom_call.1}
  #allocation0 [shape = 'u32[]', space=smem, size = 0x4, offset = 0x4, fixed_abs, tag = 'smem constant byte address 0x4 - core index']
  #allocation1 [shape = 'u32[144,128]{1,0:T(1,128)}', space=vmem, size = 0x12000, scoped, tag = 'internal scratch']
  %s0 = inlined_call_operand.hbm [shape: f32[4,8,32], index: 0, kind: input, shape index: {}]
  %s1 = inlined_call_operand.hbm [shape: f32[4,16,32], index: 1, kind: input, shape index: {}]
  %s2 = inlined_call_operand.hbm [shape: f32[4,16,32], index: 2, kind: input, shape index: {}]
  %s3 = inlined_call_operand.hbm [shape: f32[4,8,32], index: 3, kind: output, shape index: {0}]
  %s4 = inlined_call_operand.hbm [shape: f32[4,8,16], index: 4, kind: output, shape index: {1}]
  %5 = xla_tuple %s3, %s4
  %s6 = sld [smem:[#allocation0]]
  $region65: #{tpu_custom_call.1} parent=0
    _
  %s8 = ssub.s32 1, %s6
  %s9 = scalar_select 0, %s8, %s6
  $region1: #{tpu_custom_call.1} parent=0
    #allocation2 [shape = 'u8[16384]{0}', space=vmem, size = 0x4000, scoped, tag = 'input window, operand 0']
    #allocation3 [shape = 's32[2]{0}', space=sflag, size = 0x8, scoped, tag = 'scoped memory for tpu_custom_call.1']
    #allocation4 [shape = 's32[2]{0}', space=sflag, size = 0x8, scoped, tag = 'scoped memory for tpu_custom_call.1']
    #allocation5 [shape = 'u8[32768]{0}', space=vmem, size = 0x8000, scoped, tag = 'input window, operand 1']
    #allocation6 [shape = 's32[2]{0}', space=sflag, size = 0x8, scoped, tag = 'scoped memory for tpu_custom_call.1']
    #allocation7 [shape = 'u8[32768]{0}', space=vmem, size = 0x8000, scoped, tag = 'input window, operand 2']
    #allocation8 [shape = 'u8[16384]{0}', space=vmem, size = 0x4000, scoped, tag = 'output window, operand 0']
    #allocation9 [shape = 'u8[16384]{0}', space=vmem, size = 0x4000, scoped, tag = 'output window, operand 1']
    #allocation10 [shape = 's32[2]{0}', space=sflag, size = 0x8, scoped, tag = 'scoped memory for tpu_custom_call.1']
    %10 = vsyncpa [#allocation3], 0
    %s11 = scalar_lea.sflag [#allocation3], 1
    %12 = vsyncpa %s11, 0
    %13 = vsyncpa [#allocation6], 0
    %s14 = scalar_lea.sflag [#allocation6], 1
    %15 = vsyncpa %s14, 0
    %16 = vsyncpa [#allocation4], 0
    %s17 = scalar_lea.sflag [#allocation4], 1
    %18 = vsyncpa %s17, 0
    %19 = vsyncpa [#allocation10], 0
    %s20 = scalar_lea.sflag [#allocation10], 1
    %21 = vsyncpa %s20, 0
    loop: start=0, step=1, limit=4
    $region2: #{tpu_custom_call.1} parent=1 // loop_pre_header
      _
    $region3: #{tpu_custom_call.1} parent=1 // loop_header
      %s23 = sphi 0, %s27
      %p24 = scmp.ge.s32.totalorder %s23, 4
      %s33 = sphi 0, %s35
      %s36 = sphi 0, %s33
      %s37 = sphi 0, %s36
      %s53 = sphi 0, %s37
      %s59 = sphi 0, %s61
      %s62 = sphi 0, %s59
      %s63 = sphi 0, %s62
      %s79 = sphi 0, %s63
      %s85 = sphi 0, %s87
      %s88 = sphi 0, %s85
      %s89 = sphi 0, %s88
      %s105 = sphi 0, %s89
      %s111 = sphi 0, %s113
      %s114 = sphi 0, %s111
      %s115 = sphi 0, %s114
      %s131 = sphi 0, %s115
      %s137 = sphi 0, %s139
      %s140 = sphi 0, %s137
      %s141 = sphi 0, %s140
      %s157 = sphi 0, %s141
    $region4: #{tpu_custom_call.1} parent=1 // loop_header_branch
      %26 = sbr.rel (%p24) target = $region8
    $region5: #{tpu_custom_call.1} parent=1 // loop_body
      %s28 = ssub.s32 %s23, 1
      %s29 = ssub.s32 %s23, 2
      %s30 = sadd.s32 %s23, 1
      %s31 = ssub.s32 %s23, %s30
      %p32 = scmp.eq.s32.totalorder %s31, 0
      %s34 = sadd.s32 %s33, 1
      %s35 = scalar_select %p32, %s33, %s34
      %p38 = pneg %p32
      %p39 = scmp.eq.s32.totalorder %s23, 1
      %p40 = por %p38, %p39
      %p41 = scmp.ne.s32.totalorder %s33, %s36
      %p42 = scmp.eq.s32.totalorder %s23, 0
      %p43 = por %p41, %p42
      %p44 = scmp.ne.s32.totalorder %s33, %s36
      %p45 = scmp.eq.s32.totalorder %s28, 1
      %p46 = por %p44, %p45
      %p47 = scmp.ne.s32.totalorder %s36, %s37
      %p48 = scmp.eq.s32.totalorder %s28, 0
      %p49 = por %p47, %p48
      %p50 = scmp.ne.s32.totalorder %s36, %s37
      %p51 = scmp.eq.s32.totalorder %s29, 1
      %p52 = por %p50, %p51
      %p54 = scmp.ne.s32.totalorder %s37, %s53
      %p55 = scmp.eq.s32.totalorder %s29, 0
      %p56 = por %p54, %p55
      %s57 = ssub.s32 %s23, %s30
      %p58 = scmp.eq.s32.totalorder %s57, 0
      %s60 = sadd.s32 %s59, 1
      %s61 = scalar_select %p58, %s59, %s60
      %p64 = pneg %p58
      %p65 = scmp.eq.s32.totalorder %s23, 1
      %p66 = por %p64, %p65
      %p67 = scmp.ne.s32.totalorder %s59, %s62
      %p68 = scmp.eq.s32.totalorder %s23, 0
      %p69 = por %p67, %p68
      %p70 = scmp.ne.s32.totalorder %s59, %s62
      %p71 = scmp.eq.s32.totalorder %s28, 1
      %p72 = por %p70, %p71
      %p73 = scmp.ne.s32.totalorder %s62, %s63
      %p74 = scmp.eq.s32.totalorder %s28, 0
      %p75 = por %p73, %p74
      %p76 = scmp.ne.s32.totalorder %s62, %s63
      %p77 = scmp.eq.s32.totalorder %s29, 1
      %p78 = por %p76, %p77
      %p80 = scmp.ne.s32.totalorder %s63, %s79
      %p81 = scmp.eq.s32.totalorder %s29, 0
      %p82 = por %p80, %p81
      %s83 = ssub.s32 %s23, %s30
      %p84 = scmp.eq.s32.totalorder %s83, 0
      %s86 = sadd.s32 %s85, 1
      %s87 = scalar_select %p84, %s85, %s86
      %p90 = pneg %p84
      %p91 = scmp.eq.s32.totalorder %s23, 1
      %p92 = por %p90, %p91
      %p93 = scmp.ne.s32.totalorder %s85, %s88
      %p94 = scmp.eq.s32.totalorder %s23, 0
      %p95 = por %p93, %p94
      %p96 = scmp.ne.s32.totalorder %s85, %s88
      %p97 = scmp.eq.s32.totalorder %s28, 1
      %p98 = por %p96, %p97
      %p99 = scmp.ne.s32.totalorder %s88, %s89
      %p100 = scmp.eq.s32.totalorder %s28, 0
      %p101 = por %p99, %p100
      %p102 = scmp.ne.s32.totalorder %s88, %s89
      %p103 = scmp.eq.s32.totalorder %s29, 1
      %p104 = por %p102, %p103
      %p106 = scmp.ne.s32.totalorder %s89, %s105
      %p107 = scmp.eq.s32.totalorder %s29, 0
      %p108 = por %p106, %p107
      %s109 = ssub.s32 %s23, %s30
      %p110 = scmp.eq.s32.totalorder %s109, 0
      %s112 = sadd.s32 %s111, 1
      %s113 = scalar_select %p110, %s111, %s112
      %p116 = pneg %p110
      %p117 = scmp.eq.s32.totalorder %s23, 1
      %p118 = por %p116, %p117
      %p119 = scmp.ne.s32.totalorder %s111, %s114
      %p120 = scmp.eq.s32.totalorder %s23, 0
      %p121 = por %p119, %p120
      %p122 = scmp.ne.s32.totalorder %s111, %s114
      %p123 = scmp.eq.s32.totalorder %s28, 1
      %p124 = por %p122, %p123
      %p125 = scmp.ne.s32.totalorder %s114, %s115
      %p126 = scmp.eq.s32.totalorder %s28, 0
      %p127 = por %p125, %p126
      %p128 = scmp.ne.s32.totalorder %s114, %s115
      %p129 = scmp.eq.s32.totalorder %s29, 1
      %p130 = por %p128, %p129
      %p132 = scmp.ne.s32.totalorder %s115, %s131
      %p133 = scmp.eq.s32.totalorder %s29, 0
      %p134 = por %p132, %p133
      %s135 = ssub.s32 %s23, %s30
      %p136 = scmp.eq.s32.totalorder %s135, 0
      %s138 = sadd.s32 %s137, 1
      %s139 = scalar_select %p136, %s137, %s138
      %p142 = pneg %p136
      %p143 = scmp.eq.s32.totalorder %s23, 1
      %p144 = por %p142, %p143
      %p145 = scmp.ne.s32.totalorder %s137, %s140
      %p146 = scmp.eq.s32.totalorder %s23, 0
      %p147 = por %p145, %p146
      %p148 = scmp.ne.s32.totalorder %s137, %s140
      %p149 = scmp.eq.s32.totalorder %s28, 1
      %p150 = por %p148, %p149
      %p151 = scmp.ne.s32.totalorder %s140, %s141
      %p152 = scmp.eq.s32.totalorder %s28, 0
      %p153 = por %p151, %p152
      %p154 = scmp.ne.s32.totalorder %s140, %s141
      %p155 = scmp.eq.s32.totalorder %s29, 1
      %p156 = por %p154, %p155
      %p158 = scmp.ne.s32.totalorder %s141, %s157
      %p159 = scmp.eq.s32.totalorder %s29, 0
      %p160 = por %p158, %p159
      %p161 = scmp.le.s32.totalorder 1, %s23
      %p162 = scmp.lt.s32.totalorder %s23, 3
      %p163 = pnand %p161, %p162
      %p164 = pneg %p163
      // Predicated region
      $region9: #{tpu_custom_call.1} parent=5 // pred_check
        _
      $region10: #{tpu_custom_call.1} parent=5 // pred_check_branch
        %166 = sbr.rel (%p163) target = $region12
      $region11: #{tpu_custom_call.1} parent=5 // pred_region
        %s167 = ssub.s32 %s23, 1
      $region12: #{tpu_custom_call.1} parent=5 // pred_fallthru
        _
      %p168 = scmp.lt.s32.totalorder %s23, 2
      // Predicated region
      $region13: #{tpu_custom_call.1} parent=5 // pred_check
        %p169 = pneg %p168
      $region14: #{tpu_custom_call.1} parent=5 // pred_check_branch
        %171 = sbr.rel (%p169) target = $region16
      $region15: #{tpu_custom_call.1} parent=5 // pred_region
        // Predicated region
        $region17: #{tpu_custom_call.1} parent=15 // pred_check
          %p172 = pneg %p43
        $region18: #{tpu_custom_call.1} parent=15 // pred_check_branch
          %174 = sbr.rel (%p172) target = $region20
        $region19: #{tpu_custom_call.1} parent=15 // pred_region
          %s175 = sand.u32 %s33, 1
          %s176 = scalar_lea.sflag [#allocation3], %s175
          %s177 = sand.u32 %s33, 1
          %s178 = smul.addr %s177, 16
          %s179 = scalar_lea.vmem [#allocation2], %s178
          %s180 = smul.u32 2, %s23
          %s182 = ssub.s32 256, 256
          %183 = vsyncadd %s176, %s182
          %s184 = smul.addr %s180, 128
          %s185 = scalar_lea.hbm %s0, %s184
          %s186 = sshll.u32 %s179, 4
          %s187 = int_to_ptr.vmem [resolvable:$true] %s186
          %192 = dma.hbm_to_vmem [thread:$0]  %s185, 256, %s187, %s176, 128, 128, 8
        $region20: #{tpu_custom_call.1} parent=15 // pred_fallthru
          _
        // Predicated region
        $region21: #{tpu_custom_call.1} parent=15 // pred_check
          %p193 = pneg %p69
        $region22: #{tpu_custom_call.1} parent=15 // pred_check_branch
          %195 = sbr.rel (%p193) target = $region24
        $region23: #{tpu_custom_call.1} parent=15 // pred_region
          %s196 = sand.u32 %s23, 1
          %s197 = scalar_lea.sflag [#allocation6], %s196
          %s198 = sand.u32 %s59, 1
          %s199 = smul.addr %s198, 32
          %s200 = scalar_lea.vmem [#allocation5], %s199
          %s201 = smul.u32 2, %s23
          %s203 = ssub.s32 512, 512
          %204 = vsyncadd %s197, %s203
          %s205 = smul.addr %s201, 2
          %s206 = smul.addr %s205, 128
          %s207 = scalar_lea.hbm %s1, %s206
          %s208 = sshll.u32 %s200, 4
          %s209 = int_to_ptr.vmem [resolvable:$true] %s208
          %214 = dma.hbm_to_vmem [thread:$0]  %s207, 512, %s209, %s197, 128, 128, 8
        $region24: #{tpu_custom_call.1} parent=15 // pred_fallthru
          _
        // Predicated region
        $region25: #{tpu_custom_call.1} parent=15 // pred_check
          %p215 = pneg %p95
        $region26: #{tpu_custom_call.1} parent=15 // pred_check_branch
          %217 = sbr.rel (%p215) target = $region28
        $region27: #{tpu_custom_call.1} parent=15 // pred_region
          %s218 = sand.u32 %s23, 1
          %s219 = scalar_lea.sflag [#allocation6], %s218
          %s220 = sand.u32 %s85, 1
          %s221 = smul.addr %s220, 32
          %s222 = scalar_lea.vmem [#allocation7], %s221
          %s223 = smul.u32 2, %s23
          %s225 = ssub.s32 512, 512
          %226 = vsyncadd %s219, %s225
          %s227 = smul.addr %s223, 2
          %s228 = smul.addr %s227, 128
          %s229 = scalar_lea.hbm %s2, %s228
          %s230 = sshll.u32 %s222, 4
          %s231 = int_to_ptr.vmem [resolvable:$true] %s230
          %236 = dma.hbm_to_vmem [thread:$0]  %s229, 512, %s231, %s219, 128, 128, 8
        $region28: #{tpu_custom_call.1} parent=15 // pred_fallthru
          _
      $region16: #{tpu_custom_call.1} parent=5 // pred_fallthru
        _
      %p237 = scmp.le.s32.totalorder 1, %s23
      %p238 = scmp.lt.s32.totalorder %s23, 3
      %p239 = pnand %p237, %p238
      %p240 = pneg %p239
      // Predicated region
      $region29: #{tpu_custom_call.1} parent=5 // pred_check
        _
      $region30: #{tpu_custom_call.1} parent=5 // pred_check_branch
        %242 = sbr.rel (%p239) target = $region32
      $region31: #{tpu_custom_call.1} parent=5 // pred_region
        %s243 = ssub.s32 %s23, 1
        %s244 = sand.u32 %s36, 1
        %s245 = scalar_lea.sflag [#allocation3], %s244
        %s246 = sand.u32 %s36, 1
        %s247 = smul.addr %s246, 16
        %s248 = scalar_lea.vmem [#allocation2], %s247
        // Predicated region
        $region33: #{tpu_custom_call.1} parent=31 // pred_check
          %p249 = pneg %p49
        $region34: #{tpu_custom_call.1} parent=31 // pred_check_branch
          %251 = sbr.rel (%p249) target = $region36
        $region35: #{tpu_custom_call.1} parent=31 // pred_region
          %252 = dma.done %s245, 256
        $region36: #{tpu_custom_call.1} parent=31 // pred_fallthru
          _
        %s253 = sand.u32 %s28, 1
        %s254 = scalar_lea.sflag [#allocation6], %s253
        %s255 = sand.u32 %s62, 1
        %s256 = smul.addr %s255, 32
        %s257 = scalar_lea.vmem [#allocation5], %s256
        // Predicated region
        $region37: #{tpu_custom_call.1} parent=31 // pred_check
          %p258 = pneg %p75
        $region38: #{tpu_custom_call.1} parent=31 // pred_check_branch
          %260 = sbr.rel (%p258) target = $region40
        $region39: #{tpu_custom_call.1} parent=31 // pred_region
          %261 = dma.done %s254, 512
        $region40: #{tpu_custom_call.1} parent=31 // pred_fallthru
          _
        %s262 = sand.u32 %s28, 1
        %s263 = scalar_lea.sflag [#allocation6], %s262
        %s264 = sand.u32 %s88, 1
        %s265 = smul.addr %s264, 32
        %s266 = scalar_lea.vmem [#allocation7], %s265
        // Predicated region
        $region41: #{tpu_custom_call.1} parent=31 // pred_check
          %p267 = pneg %p101
        $region42: #{tpu_custom_call.1} parent=31 // pred_check_branch
          %269 = sbr.rel (%p267) target = $region44
        $region43: #{tpu_custom_call.1} parent=31 // pred_region
          %270 = dma.done %s263, 512
        $region44: #{tpu_custom_call.1} parent=31 // pred_fallthru
          _
        %s271 = sand.u32 %s36, 1
        %s272 = scalar_lea.sflag [#allocation3], %s271
        %s273 = sand.u32 %s36, 1
        %s274 = smul.addr %s273, 16
        %s275 = scalar_lea.vmem [#allocation2], %s274
        %p276 = pneg %p49
        %p277 = pneg %p46
        %s278 = sand.u32 %s28, 1
        %s279 = scalar_lea.sflag [#allocation6], %s278
        %s280 = sand.u32 %s62, 1
        %s281 = smul.addr %s280, 32
        %s282 = scalar_lea.vmem [#allocation5], %s281
        %p283 = pneg %p75
        %p284 = pneg %p72
        %s285 = sand.u32 %s28, 1
        %s286 = scalar_lea.sflag [#allocation6], %s285
        %s287 = sand.u32 %s88, 1
        %s288 = smul.addr %s287, 32
        %s289 = scalar_lea.vmem [#allocation7], %s288
        %p290 = pneg %p101
        %p291 = pneg %p98
        %p292 = pneg %p127
        %p293 = pneg %p124
        %s294 = sand.u32 %s114, 1
        %s295 = scalar_lea.sflag [#allocation4], %s294
        %s296 = sand.u32 %s114, 1
        %s297 = smul.addr %s296, 16
        %s298 = scalar_lea.vmem [#allocation8], %s297
        %p299 = pneg %p153
        %p300 = pneg %p150
        %s301 = sand.u32 %s140, 1
        %s302 = scalar_lea.sflag [#allocation10], %s301
        %s303 = sand.u32 %s140, 1
        %s304 = smul.addr %s303, 16
        %s305 = scalar_lea.vmem [#allocation9], %s304
        %s306 = smul.u32 2, %s28
        %s307 = smul.u32 2, %s28
        %s308 = smul.u32 2, %s28
        %s309 = smul.u32 2, %s28
        %s310 = smul.u32 2, %s28
        %v311 = vld [vmem:[%s248] sm:$0xff]
        %v312 = vld [vmem:[%s248 + $0x8] sm:$0xff]
        %v313 = vld [vmem:[%s257] sm:$0xff]
        %v314 = vld [vmem:[%s257 + $0x8] sm:$0xff]
        %v315 = vld [vmem:[%s257 + $0x10] sm:$0xff]
        %v316 = vld [vmem:[%s257 + $0x18] sm:$0xff]
        %v317 = vld [vmem:[%s266] sm:$0xff]
        %v318 = vld [vmem:[%s266 + $0x8] sm:$0xff]
        %v319 = vld [vmem:[%s266 + $0x10] sm:$0xff]
        %v320 = vld [vmem:[%s266 + $0x18] sm:$0xff]
        %vm321 = vcmask 261120
        %v323 = vsel %vm321, %v311, 0
        %v326 = vsel %vm321, %v313, 0
        %v329 = vsel %vm321, %v314, 0
        %331 = vmatprep.subr.mxu0 0.0
        %332 = vmatpush1.xpose.msra.mxu0 %v326
        %333 = vmatprep.subr.mxu0 0.0
        %334 = vmatpush1.xpose.msra.mxu0 %v329
        %335 = vmatprep.subr.mxu0 0.0
        %336 = vmatpush1.xpose.msra.mxu0 0.0
        %337 = vmatprep.subr.mxu0 0.0
        %338 = vmatpush1.xpose.msra.mxu0 0.0
        %339 = vmatprep.subr.mxu0 0.0
        %340 = vmatpush1.xpose.msra.mxu0 0.0
        %341 = vmatprep.subr.mxu0 0.0
        %342 = vmatpush1.xpose.msra.mxu0 0.0
        %343 = vmatprep.subr.mxu0 0.0
        %344 = vmatpush1.xpose.msra.mxu0 0.0
        %345 = vmatprep.subr.mxu0 0.0
        %346 = vmatpush1.xpose.msra.mxu0 0.0
        %347 = vmatprep.subr.mxu0 0.0
        %348 = vmatpush1.xpose.msra.mxu0 0.0
        %349 = vmatprep.subr.mxu0 0.0
        %350 = vmatpush1.xpose.msra.mxu0 0.0
        %351 = vmatprep.subr.mxu0 0.0
        %352 = vmatpush1.xpose.msra.mxu0 0.0
        %353 = vmatprep.subr.mxu0 0.0
        %354 = vmatpush1.xpose.msra.mxu0 0.0
        %355 = vmatprep.subr.mxu0 0.0
        %356 = vmatpush1.xpose.msra.mxu0 0.0
        %357 = vmatprep.subr.mxu0 0.0
        %358 = vmatpush1.xpose.msra.mxu0 0.0
        %359 = vmatprep.subr.mxu0 0.0
        %360 = vmatpush1.xpose.msra.mxu0 0.0
        %361 = vmatprep.subr.mxu0 0.0
        %362 = vmatpush1.xpose.msra.mxu0 0.0
        %363 = vmatprep.subr.mxu0 0.0
        %364 = vmatpush1.xpose.msra.mxu0 0.0
        %365 = vmatprep.subr.mxu0 0.0
        %366 = vmatpush1.xpose.msra.mxu0 0.0
        %367 = vmatprep.subr.mxu0 0.0
        %368 = vmatpush1.xpose.msra.mxu0 0.0
        %369 = vmatprep.subr.mxu0 0.0
        %370 = vmatpush1.xpose.msra.mxu0 0.0
        %371 = vmatprep.subr.mxu0 0.0
        %372 = vmatpush1.xpose.msra.mxu0 0.0
        %373 = vmatprep.subr.mxu0 0.0
        %374 = vmatpush1.xpose.msra.mxu0 0.0
        %375 = vmatprep.subr.mxu0 0.0
        %376 = vmatpush1.xpose.msra.mxu0 0.0
        %377 = vmatprep.subr.mxu0 0.0
        %378 = vmatpush1.xpose.msra.mxu0 0.0
        %379 = vmatprep.subr.mxu0 0.0
        %380 = vmatpush1.xpose.msra.mxu0 0.0
        %381 = vmatprep.subr.mxu0 0.0
        %382 = vmatpush1.xpose.msra.mxu0 0.0
        %383 = vmatprep.subr.mxu0 0.0
        %384 = vmatpush1.xpose.msra.mxu0 0.0
        %385 = vmatprep.subr.mxu0 0.0
        %386 = vmatpush1.xpose.msra.mxu0 0.0
        %387 = vmatprep.subr.mxu0 0.0
        %388 = vmatpush1.xpose.msra.mxu0 0.0
        %389 = vmatprep.subr.mxu0 0.0
        %390 = vmatpush1.xpose.msra.mxu0 0.0
        %391 = vmatprep.subr.mxu0 0.0
        %392 = vmatpush1.xpose.msra.mxu0 0.0
        %393 = vmatprep.subr.mxu0 0.0
        %394 = vmatpush1.xpose.msra.mxu0 0.0
        %395 = vmatprep.mubr.f32.mxu0 0.0
        %396 = vmatmul.mubr.f32.gmra.mrb[0].mxu0 %v323
        %v397 = vpop.f32.mrb[0].mxu0
        %v398 = vadd.f32 0.0, %v397
        %v399 = vpop.f32.mrb[0].mxu0
        %400 = vdwg.mxu0
        %v402 = vsel %vm321, %v312, 0
        %v405 = vsel %vm321, %v315, 0
        %v408 = vsel %vm321, %v316, 0
        %410 = vmatprep.subr.mxu0 0.0
        %411 = vmatpush1.xpose.msra.mxu0 %v405
        %412 = vmatprep.subr.mxu0 0.0
        %413 = vmatpush1.xpose.msra.mxu0 %v408
        %414 = vmatprep.subr.mxu0 0.0
        %415 = vmatpush1.xpose.msra.mxu0 0.0
        %416 = vmatprep.subr.mxu0 0.0
        %417 = vmatpush1.xpose.msra.mxu0 0.0
        %418 = vmatprep.subr.mxu0 0.0
        %419 = vmatpush1.xpose.msra.mxu0 0.0
        %420 = vmatprep.subr.mxu0 0.0
        %421 = vmatpush1.xpose.msra.mxu0 0.0
        %422 = vmatprep.subr.mxu0 0.0
        %423 = vmatpush1.xpose.msra.mxu0 0.0
        %424 = vmatprep.subr.mxu0 0.0
        %425 = vmatpush1.xpose.msra.mxu0 0.0
        %426 = vmatprep.subr.mxu0 0.0
        %427 = vmatpush1.xpose.msra.mxu0 0.0
        %428 = vmatprep.subr.mxu0 0.0
        %429 = vmatpush1.xpose.msra.mxu0 0.0
        %430 = vmatprep.subr.mxu0 0.0
        %431 = vmatpush1.xpose.msra.mxu0 0.0
        %432 = vmatprep.subr.mxu0 0.0
        %433 = vmatpush1.xpose.msra.mxu0 0.0
        %434 = vmatprep.subr.mxu0 0.0
        %435 = vmatpush1.xpose.msra.mxu0 0.0
        %436 = vmatprep.subr.mxu0 0.0
        %437 = vmatpush1.xpose.msra.mxu0 0.0
        %438 = vmatprep.subr.mxu0 0.0
        %439 = vmatpush1.xpose.msra.mxu0 0.0
        %440 = vmatprep.subr.mxu0 0.0
        %441 = vmatpush1.xpose.msra.mxu0 0.0
        %442 = vmatprep.subr.mxu0 0.0
        %443 = vmatpush1.xpose.msra.mxu0 0.0
        %444 = vmatprep.subr.mxu0 0.0
        %445 = vmatpush1.xpose.msra.mxu0 0.0
        %446 = vmatprep.subr.mxu0 0.0
        %447 = vmatpush1.xpose.msra.mxu0 0.0
        %448 = vmatprep.subr.mxu0 0.0
        %449 = vmatpush1.xpose.msra.mxu0 0.0
        %450 = vmatprep.subr.mxu0 0.0
        %451 = vmatpush1.xpose.msra.mxu0 0.0
        %452 = vmatprep.subr.mxu0 0.0
        %453 = vmatpush1.xpose.msra.mxu0 0.0
        %454 = vmatprep.subr.mxu0 0.0
        %455 = vmatpush1.xpose.msra.mxu0 0.0
        %456 = vmatprep.subr.mxu0 0.0
        %457 = vmatpush1.xpose.msra.mxu0 0.0
        %458 = vmatprep.subr.mxu0 0.0
        %459 = vmatpush1.xpose.msra.mxu0 0.0
        %460 = vmatprep.subr.mxu0 0.0
        %461 = vmatpush1.xpose.msra.mxu0 0.0
        %462 = vmatprep.subr.mxu0 0.0
        %463 = vmatpush1.xpose.msra.mxu0 0.0
        %464 = vmatprep.subr.mxu0 0.0
        %465 = vmatpush1.xpose.msra.mxu0 0.0
        %466 = vmatprep.subr.mxu0 0.0
        %467 = vmatpush1.xpose.msra.mxu0 0.0
        %468 = vmatprep.subr.mxu0 0.0
        %469 = vmatpush1.xpose.msra.mxu0 0.0
        %470 = vmatprep.subr.mxu0 0.0
        %471 = vmatpush1.xpose.msra.mxu0 0.0
        %472 = vmatprep.subr.mxu0 0.0
        %473 = vmatpush1.xpose.msra.mxu0 0.0
        %474 = vmatprep.mubr.f32.mxu0 0.0
        %475 = vmatmul.mubr.f32.gmra.mrb[0].mxu0 %v402
        %v476 = vpop.f32.mrb[0].mxu0
        %v477 = vadd.f32 0.0, %v476
        %v478 = vpop.f32.mrb[0].mxu0
        %479 = vdwg.mxu0
        %v480 = vmul.f32 %v398, 0.17677669
        %v481 = vmul.f32 %v477, 0.17677669
        %vm482 = vcmask 130048
        %v483 = vsel %vm482, %v480, -inf
        %484 = vmax.xlane.f32.xlu0 %v483
        %v485 = vpop.xlane.xlu0 %484
        %v486 = vsel %vm482, %v481, -inf
        %487 = vmax.xlane.f32.xlu0 %v486
        %v488 = vpop.xlane.xlu0 %487
        %v489 = vsub.f32 %v480, %v485
        %v490 = vsub.f32 %v481, %v488
        %v491 = vmul.f32 %v489, 1.442695
        %v492 = vpow.pop %v491
        %v493 = vmul.f32 %v490, 1.442695
        %v494 = vpow.pop %v493
        %v495 = vsel %vm482, %v492, 0.0
        %496 = vadd.xlane.f32.xlu0 %v495
        %v497 = vpop.xlane.xlu0 %496
        %v498 = vsel %vm482, %v494, 0.0
        %499 = vadd.xlane.f32.xlu0 %v498
        %v500 = vpop.xlane.xlu0 %499
        %v501 = vrcp.pop %v497
        %v502 = vrcp.pop %v500
        %v503 = vmul.f32 %v492, %v501
        %v504 = vmul.f32 %v494, %v502
        %v506 = vsel %vm482, %v503, 0
        %508 = vmatprep.subr.mxu0 0.0
        %509 = vmatpush1.msra.mxu0 %v317
        %510 = vmatprep.subr.mxu0 0.0
        %511 = vmatpush1.msra.mxu0 %v318
        %512 = vmatprep.subr.mxu0 0.0
        %513 = vmatpush1.msra.mxu0 0.0
        %514 = vmatprep.subr.mxu0 0.0
        %515 = vmatpush1.msra.mxu0 0.0
        %516 = vmatprep.subr.mxu0 0.0
        %517 = vmatpush1.msra.mxu0 0.0
        %518 = vmatprep.subr.mxu0 0.0
        %519 = vmatpush1.msra.mxu0 0.0
        %520 = vmatprep.subr.mxu0 0.0
        %521 = vmatpush1.msra.mxu0 0.0
        %522 = vmatprep.subr.mxu0 0.0
        %523 = vmatpush1.msra.mxu0 0.0
        %524 = vmatprep.subr.mxu0 0.0
        %525 = vmatpush1.msra.mxu0 0.0
        %526 = vmatprep.subr.mxu0 0.0
        %527 = vmatpush1.msra.mxu0 0.0
        %528 = vmatprep.subr.mxu0 0.0
        %529 = vmatpush1.msra.mxu0 0.0
        %530 = vmatprep.subr.mxu0 0.0
        %531 = vmatpush1.msra.mxu0 0.0
        %532 = vmatprep.subr.mxu0 0.0
        %533 = vmatpush1.msra.mxu0 0.0
        %534 = vmatprep.subr.mxu0 0.0
        %535 = vmatpush1.msra.mxu0 0.0
        %536 = vmatprep.subr.mxu0 0.0
        %537 = vmatpush1.msra.mxu0 0.0
        %538 = vmatprep.subr.mxu0 0.0
        %539 = vmatpush1.msra.mxu0 0.0
        %540 = vmatprep.subr.mxu0 0.0
        %541 = vmatpush1.msra.mxu0 0.0
        %542 = vmatprep.subr.mxu0 0.0
        %543 = vmatpush1.msra.mxu0 0.0
        %544 = vmatprep.subr.mxu0 0.0
        %545 = vmatpush1.msra.mxu0 0.0
        %546 = vmatprep.subr.mxu0 0.0
        %547 = vmatpush1.msra.mxu0 0.0
        %548 = vmatprep.subr.mxu0 0.0
        %549 = vmatpush1.msra.mxu0 0.0
        %550 = vmatprep.subr.mxu0 0.0
        %551 = vmatpush1.msra.mxu0 0.0
        %552 = vmatprep.subr.mxu0 0.0
        %553 = vmatpush1.msra.mxu0 0.0
        %554 = vmatprep.subr.mxu0 0.0
        %555 = vmatpush1.msra.mxu0 0.0
        %556 = vmatprep.subr.mxu0 0.0
        %557 = vmatpush1.msra.mxu0 0.0
        %558 = vmatprep.subr.mxu0 0.0
        %559 = vmatpush1.msra.mxu0 0.0
        %560 = vmatprep.subr.mxu0 0.0
        %561 = vmatpush1.msra.mxu0 0.0
        %562 = vmatprep.subr.mxu0 0.0
        %563 = vmatpush1.msra.mxu0 0.0
        %564 = vmatprep.subr.mxu0 0.0
        %565 = vmatpush1.msra.mxu0 0.0
        %566 = vmatprep.subr.mxu0 0.0
        %567 = vmatpush1.msra.mxu0 0.0
        %568 = vmatprep.subr.mxu0 0.0
        %569 = vmatpush1.msra.mxu0 0.0
        %570 = vmatprep.subr.mxu0 0.0
        %571 = vmatpush1.msra.mxu0 0.0
        %572 = vmatprep.mubr.f32.mxu0 0.0
        %573 = vmatmul.mubr.f32.gmra.mrb[0].mxu0 %v506
        %v574 = vpop.f32.mrb[0].mxu0
        %v575 = vadd.f32 0.0, %v574
        %v576 = vpop.f32.mrb[0].mxu0
        %577 = vdwg.mxu0
        %v579 = vsel %vm482, %v504, 0
        %581 = vmatprep.subr.mxu0 0.0
        %582 = vmatpush1.msra.mxu0 %v319
        %583 = vmatprep.subr.mxu0 0.0
        %584 = vmatpush1.msra.mxu0 %v320
        %585 = vmatprep.subr.mxu0 0.0
        %586 = vmatpush1.msra.mxu0 0.0
        %587 = vmatprep.subr.mxu0 0.0
        %588 = vmatpush1.msra.mxu0 0.0
        %589 = vmatprep.subr.mxu0 0.0
        %590 = vmatpush1.msra.mxu0 0.0
        %591 = vmatprep.subr.mxu0 0.0
        %592 = vmatpush1.msra.mxu0 0.0
        %593 = vmatprep.subr.mxu0 0.0
        %594 = vmatpush1.msra.mxu0 0.0
        %595 = vmatprep.subr.mxu0 0.0
        %596 = vmatpush1.msra.mxu0 0.0
        %597 = vmatprep.subr.mxu0 0.0
        %598 = vmatpush1.msra.mxu0 0.0
        %599 = vmatprep.subr.mxu0 0.0
        %600 = vmatpush1.msra.mxu0 0.0
        %601 = vmatprep.subr.mxu0 0.0
        %602 = vmatpush1.msra.mxu0 0.0
        %603 = vmatprep.subr.mxu0 0.0
        %604 = vmatpush1.msra.mxu0 0.0
        %605 = vmatprep.subr.mxu0 0.0
        %606 = vmatpush1.msra.mxu0 0.0
        %607 = vmatprep.subr.mxu0 0.0
        %608 = vmatpush1.msra.mxu0 0.0
        %609 = vmatprep.subr.mxu0 0.0
        %610 = vmatpush1.msra.mxu0 0.0
        %611 = vmatprep.subr.mxu0 0.0
        %612 = vmatpush1.msra.mxu0 0.0
        %613 = vmatprep.subr.mxu0 0.0
        %614 = vmatpush1.msra.mxu0 0.0
        %615 = vmatprep.subr.mxu0 0.0
        %616 = vmatpush1.msra.mxu0 0.0
        %617 = vmatprep.subr.mxu0 0.0
        %618 = vmatpush1.msra.mxu0 0.0
        %619 = vmatprep.subr.mxu0 0.0
        %620 = vmatpush1.msra.mxu0 0.0
        %621 = vmatprep.subr.mxu0 0.0
        %622 = vmatpush1.msra.mxu0 0.0
        %623 = vmatprep.subr.mxu0 0.0
        %624 = vmatpush1.msra.mxu0 0.0
        %625 = vmatprep.subr.mxu0 0.0
        %626 = vmatpush1.msra.mxu0 0.0
        %627 = vmatprep.subr.mxu0 0.0
        %628 = vmatpush1.msra.mxu0 0.0
        %629 = vmatprep.subr.mxu0 0.0
        %630 = vmatpush1.msra.mxu0 0.0
        %631 = vmatprep.subr.mxu0 0.0
        %632 = vmatpush1.msra.mxu0 0.0
        %633 = vmatprep.subr.mxu0 0.0
        %634 = vmatpush1.msra.mxu0 0.0
        %635 = vmatprep.subr.mxu0 0.0
        %636 = vmatpush1.msra.mxu0 0.0
        %637 = vmatprep.subr.mxu0 0.0
        %638 = vmatpush1.msra.mxu0 0.0
        %639 = vmatprep.subr.mxu0 0.0
        %640 = vmatpush1.msra.mxu0 0.0
        %641 = vmatprep.subr.mxu0 0.0
        %642 = vmatpush1.msra.mxu0 0.0
        %643 = vmatprep.subr.mxu0 0.0
        %644 = vmatpush1.msra.mxu0 0.0
        %645 = vmatprep.mubr.f32.mxu0 0.0
        %646 = vmatmul.mubr.f32.gmra.mrb[0].mxu0 %v579
        %v647 = vpop.f32.mrb[0].mxu0
        %v648 = vadd.f32 0.0, %v647
        %v649 = vpop.f32.mrb[0].mxu0
        %650 = vdwg.mxu0
        %651 = vst.msk [vmem:[%s298] sm:$0xff] %vm321, %v575
        %652 = vst.msk [vmem:[%s298 + $0x8] sm:$0xff] %vm321, %v648
        %653 = vst.msk [vmem:[%s305] sm:$0xff] %vm482, %v503
        %654 = vst.msk [vmem:[%s305 + $0x8] sm:$0xff] %vm482, %v504
        %s655 = sand.u32 %s114, 1
        %s656 = scalar_lea.sflag [#allocation4], %s655
        %s657 = sand.u32 %s114, 1
        %s658 = smul.addr %s657, 16
        %s659 = scalar_lea.vmem [#allocation8], %s658
        %s660 = sand.u32 %s140, 1
        %s661 = scalar_lea.sflag [#allocation10], %s660
        %s662 = sand.u32 %s140, 1
        %s663 = smul.addr %s662, 16
        %s664 = scalar_lea.vmem [#allocation9], %s663
        // Predicated region
        $region45: #{tpu_custom_call.1} parent=31 // pred_check
          %p665 = pneg %p124
        $region46: #{tpu_custom_call.1} parent=31 // pred_check_branch
          %667 = sbr.rel (%p665) target = $region48
        $region47: #{tpu_custom_call.1} parent=31 // pred_region
          %s668 = smul.u32 2, %s28
          %s670 = ssub.s32 256, 256
          %671 = vsyncadd %s656, %s670
          %s672 = smul.addr %s668, 128
          %s673 = scalar_lea.hbm %s3, %s672
          %s674 = sshll.u32 %s659, 4
          %s675 = int_to_ptr.vmem [resolvable:$true] %s674
          %680 = dma.vmem_to_hbm [thread:$0]  %s675, 256, %s673, %s656, 128, 128, 8
        $region48: #{tpu_custom_call.1} parent=31 // pred_fallthru
          _
        // Predicated region
        $region49: #{tpu_custom_call.1} parent=31 // pred_check
          %p681 = pneg %p150
        $region50: #{tpu_custom_call.1} parent=31 // pred_check_branch
          %683 = sbr.rel (%p681) target = $region52
        $region51: #{tpu_custom_call.1} parent=31 // pred_region
          %s684 = smul.u32 2, %s28
          %s686 = ssub.s32 256, 256
          %687 = vsyncadd %s661, %s686
          %s688 = smul.addr %s684, 128
          %s689 = scalar_lea.hbm %s4, %s688
          %s690 = sshll.u32 %s664, 4
          %s691 = int_to_ptr.vmem [resolvable:$true] %s690
          %696 = dma.vmem_to_hbm [thread:$0]  %s691, 256, %s689, %s661, 128, 128, 8
        $region52: #{tpu_custom_call.1} parent=31 // pred_fallthru
          _
      $region32: #{tpu_custom_call.1} parent=5 // pred_fallthru
        _
      %p697 = scmp.le.s32.totalorder 2, %s23
      // Predicated region
      $region53: #{tpu_custom_call.1} parent=5 // pred_check
        %p698 = pneg %p697
      $region54: #{tpu_custom_call.1} parent=5 // pred_check_branch
        %700 = sbr.rel (%p698) target = $region56
      $region55: #{tpu_custom_call.1} parent=5 // pred_region
        %s701 = ssub.s32 %s23, 2
        // Predicated region
        $region57: #{tpu_custom_call.1} parent=55 // pred_check
          %p702 = pneg %p130
        $region58: #{tpu_custom_call.1} parent=55 // pred_check_branch
          %704 = sbr.rel (%p702) target = $region60
        $region59: #{tpu_custom_call.1} parent=55 // pred_region
          %s705 = sand.u32 %s115, 1
          %s706 = scalar_lea.sflag [#allocation4], %s705
          %s707 = sand.u32 %s115, 1
          %s708 = smul.addr %s707, 16
          %s709 = scalar_lea.vmem [#allocation8], %s708
          %710 = dma.done %s706, 256
        $region60: #{tpu_custom_call.1} parent=55 // pred_fallthru
          _
        // Predicated region
        $region61: #{tpu_custom_call.1} parent=55 // pred_check
          %p711 = pneg %p156
        $region62: #{tpu_custom_call.1} parent=55 // pred_check_branch
          %713 = sbr.rel (%p711) target = $region64
        $region63: #{tpu_custom_call.1} parent=55 // pred_region
          %s714 = sand.u32 %s141, 1
          %s715 = scalar_lea.sflag [#allocation10], %s714
          %s716 = sand.u32 %s141, 1
          %s717 = smul.addr %s716, 16
          %s718 = scalar_lea.vmem [#allocation9], %s717
          %719 = dma.done %s715, 256
        $region64: #{tpu_custom_call.1} parent=55 // pred_fallthru
          _
      $region56: #{tpu_custom_call.1} parent=5 // pred_fallthru
        _
    $region6: #{tpu_custom_call.1} parent=1 // loop_footer
      %s27 = sadd.s32 1, %s23
    $region7: #{tpu_custom_call.1} parent=1 // loop_footer_branch
      %22 = sbr.rel target = $region3
    $region8: #{tpu_custom_call.1} parent=1 // loop_exit
      _
    %720 = vsyncpa [#allocation3], 1
    %s721 = scalar_lea.sflag [#allocation3], 1
    %722 = vsyncpa %s721, 1
    %723 = vsyncpa [#allocation6], 1
    %s724 = scalar_lea.sflag [#allocation6], 1
    %725 = vsyncpa %s724, 1
    %726 = vsyncpa [#allocation4], 1
    %s727 = scalar_lea.sflag [#allocation4], 1
    %728 = vsyncpa %s727, 1
    %729 = vsyncpa [#allocation10], 1
    %s730 = scalar_lea.sflag [#allocation10], 1
    %731 = vsyncpa %s730, 1

</llo_original>
